<compile_context>
chip_gen: v6e
topology: v6e:2x2x1
jax: 0.10.0
libtpu: 0.0.40
codegen_flags: <defaults>
</compile_context>

<pallas_src>
import math
from functools import partial

import jax
import jax.numpy as jnp
from jax.experimental import pallas as pl
from jax.experimental.pallas import tpu as pltpu


# ---------------------------------------------------------------------------
# Pallas kernel: whole MISA forward (means + 6 encoders + 3 decoders + fusion)
# ---------------------------------------------------------------------------
def misa_kernel(v_ref, a_ref, t_ref,
                w1v_ref, w1a_ref, w1t_ref, b1v_ref, b1a_ref, b1t_ref,
                w2v_ref, w2a_ref, w2t_ref, b2_ref,
                y_ref):
    f32 = jnp.float32
    cd = w1v_ref.dtype                                   # compute dtype

    # Sequence means folded into the kernel: the (tb, S, D) blocks are bytes
    # we had to read from HBM anyway; reducing here removes the wrapper-side
    # mean/concat/cast round trip entirely.
    am = jnp.mean(a_ref[...].astype(f32), axis=1).astype(cd)   # (tb, Da)
    tm = jnp.mean(t_ref[...].astype(f32), axis=1).astype(cd)   # (tb, Dt)
    xv = v_ref[...].astype(cd)                                 # (tb, Dv)

    def enc(x, w_ref, b_ref):
        e = jnp.dot(x, w_ref[...], preferred_element_type=f32) + b_ref[...]
        # Fused ReLU + downcast: hidden activation kept in compute dtype.
        return jnp.maximum(e, 0.0).astype(cd)                  # (tb, 2h)

    ev = enc(xv, w1v_ref, b1v_ref)        # [cv | pv]
    ea = enc(am, w1a_ref, b1a_ref)        # [ca | pa]
    et = enc(tm, w1t_ref, b1t_ref)        # [ct | pt]

    # Decoders + fusion: each modality contributes one (2h, Dout) row block of
    # the block-diagonal decoder (with the fusion column appended); summing the
    # three dots reproduces [rv | ra | rt | fused] exactly.
    y = (jnp.dot(ev, w2v_ref[...], preferred_element_type=f32)
         + jnp.dot(ea, w2a_ref[...], preferred_element_type=f32)
         + jnp.dot(et, w2t_ref[...], preferred_element_type=f32)
         + b2_ref[...])                                        # (tb, Dout) f32
    y_ref[...] = y.astype(y_ref.dtype)


# ---------------------------------------------------------------------------
# One-time weight re-layout (cache per model in practice; here it lives under
# the same jit as the kernel, so it fuses with the call and is weight-sized).
# ---------------------------------------------------------------------------
def pack_misa_params(p, compute_dtype):
    f32 = jnp.float32
    h = p["wcv"].shape[1]
    Dv, Da, Dt = p["wcv"].shape[0], p["wca"].shape[0], p["wct"].shape[0]

    # Encoder stage: per-modality [content | private] weight/bias pairs.
    w1v = jnp.concatenate([p["wcv"], p["wpv"]], axis=1)        # (Dv, 2h)
    w1a = jnp.concatenate([p["wca"], p["wpa"]], axis=1)        # (Da, 2h)
    w1t = jnp.concatenate([p["wct"], p["wpt"]], axis=1)        # (Dt, 2h)
    b1v = jnp.concatenate([p["bcv"], p["bpv"]], axis=1)        # (1, 2h)
    b1a = jnp.concatenate([p["bca"], p["bpa"]], axis=1)
    b1t = jnp.concatenate([p["bct"], p["bpt"]], axis=1)

    # Decoder + fusion stage.  wf rows are in the reference order
    # [cv, ca, ct, pv, pa, pt]; regroup them per modality as [c_m ; p_m].
    wf = p["wf"]                                               # (6h, 1)
    wf_v = jnp.concatenate([wf[0:h],       wf[3 * h:4 * h]], axis=0)   # (2h, 1)
    wf_a = jnp.concatenate([wf[h:2 * h],   wf[4 * h:5 * h]], axis=0)
    wf_t = jnp.concatenate([wf[2 * h:3 * h], wf[5 * h:6 * h]], axis=0)

    def z(n):
        return jnp.zeros((2 * h, n), f32)

    w2v = jnp.concatenate([p["wvd"], z(Da),     z(Dt),     wf_v], axis=1)
    w2a = jnp.concatenate([z(Dv),    p["wad"],  z(Dt),     wf_a], axis=1)
    w2t = jnp.concatenate([z(Dv),    z(Da),     p["wtd"],  wf_t], axis=1)
    b2 = jnp.concatenate([p["bvd"], p["bad"], p["btd"], p["bf"]], axis=1)

    cd = compute_dtype
    return (w1v.astype(cd), w1a.astype(cd), w1t.astype(cd),
            b1v.astype(f32), b1a.astype(f32), b1t.astype(f32),
            w2v.astype(cd), w2a.astype(cd), w2t.astype(cd), b2.astype(f32))


# ---------------------------------------------------------------------------
# Wrapper (jitted as one unit so the packing and the output slicing fuse with
# the pallas_call / downstream consumers — no extra HBM round trips).
# ---------------------------------------------------------------------------
def _round_up(x, m):
    return ((x + m - 1) // m) * m


@partial(jax.jit, static_argnames=("compute_dtype", "out_dtype", "batch_tile"))
def misa_forward(v, a, t, params, *, compute_dtype=jnp.bfloat16,
                 out_dtype=None, batch_tile=512):
    # `t` corresponds to fd['t'] (use_live_text=True); fd['p'] selection is a
    # caller concern.  out_dtype defaults to compute_dtype (bf16) to halve the
    # Y write bytes; pass jnp.float32 if the fused score feeds an f32 loss.
    out_dtype = compute_dtype if out_dtype is None else out_dtype

    B, Dv = v.shape
    Sa, Da = a.shape[1], a.shape[2]
    St, Dt = t.shape[1], t.shape[2]
    h = params["wcv"].shape[1]
    h2 = 2 * h
    Din = Dv + Da + Dt
    Dout = Din + 1

    packed = pack_misa_params(params, compute_dtype)
    (w1v, w1a, w1t, b1v, b1a, b1t, w2v, w2a, w2t, b2) = packed

    # Batch tiling: small batches run as a single block (grid overhead would
    # dominate); large batches get >=4 grid steps so v7x's two TensorCores
    # both get work and the HBM<->VMEM copies pipeline on v5e/v6e.  Per-step
    # VMEM footprint at tb=512 is ~1.5 MiB (double-buffered activations +
    # resident weights) — far under even v7x's 64 MiB, so no vmem override.
    if B <= 256:
        tb = B
    else:
        tb = max(8, min(batch_tile, _round_up(pl.cdiv(B, 4), 8)))
    grid = (pl.cdiv(B, tb),)

    def resident(arr):
        # Weights/biases: constant block index -> stay VMEM-resident.
        return pl.BlockSpec(arr.shape, lambda i: (0, 0))

    # Advisory cost so XLA can overlap this short call with neighbouring ops.
    flops = 2 * B * (Din * h2 + 3 * h2 * Dout)
    bytes_accessed = (v.size * v.dtype.itemsize
                      + a.size * a.dtype.itemsize
                      + t.size * t.dtype.itemsize
                      + B * Dout * jnp.dtype(out_dtype).itemsize
                      + sum(x.size * x.dtype.itemsize for x in packed))
    cost = pl.CostEstimate(flops=flops, transcendentals=0,
                           bytes_accessed=bytes_accessed)

    y = pl.pallas_call(
        misa_kernel,
        out_shape=jax.ShapeDtypeStruct((B, Dout), out_dtype),
        grid=grid,
        in_specs=[
            pl.BlockSpec((tb, Dv), lambda i: (i, 0)),
            pl.BlockSpec((tb, Sa, Da), lambda i: (i, 0, 0)),
            pl.BlockSpec((tb, St, Dt), lambda i: (i, 0, 0)),
            resident(w1v), resident(w1a), resident(w1t),
            resident(b1v), resident(b1a), resident(b1t),
            resident(w2v), resident(w2a), resident(w2t), resident(b2),
        ],
        out_specs=pl.BlockSpec((tb, Dout), lambda i: (i, 0)),
        compiler_params=pltpu.CompilerParams(
            dimension_semantics=("parallel",)),
        cost_estimate=cost,
    )(v, a, t, *packed)

    # Slices stay inside this jit -> they fuse with downstream consumers
    # instead of re-materializing Y.
    rv = y[:, :Dv]
    ra = y[:, Dv:Dv + Da]
    rt = y[:, Dv + Da:Din]
    fused = y[:, Din]                      # == fusion(...).squeeze(-1)
    return fused, rv, ra, rt


# ---------------------------------------------------------------------------
# Deterministic parameter init (xavier-normal-like) + pure-JAX reference
# ---------------------------------------------------------------------------
def init_params(key, v_dim, a_dim, t_dim, h_dim):
    def lin(k, fan_in, fan_out):
        std = math.sqrt(2.0 / (fan_in + fan_out))
        w = jax.random.normal(k, (fan_in, fan_out), jnp.float32) * std
        b = jnp.zeros((1, fan_out), jnp.float32)
        return w, b

    keys = jax.random.split(key, 10)
    p = {}
    p["wcv"], p["bcv"] = lin(keys[0], v_dim, h_dim)
    p["wca"], p["bca"] = lin(keys[1], a_dim, h_dim)
    p["wct"], p["bct"] = lin(keys[2], t_dim, h_dim)
    p["wpv"], p["bpv"] = lin(keys[3], v_dim, h_dim)
    p["wpa"], p["bpa"] = lin(keys[4], a_dim, h_dim)
    p["wpt"], p["bpt"] = lin(keys[5], t_dim, h_dim)
    p["wvd"], p["bvd"] = lin(keys[6], 2 * h_dim, v_dim)
    p["wad"], p["bad"] = lin(keys[7], 2 * h_dim, a_dim)
    p["wtd"], p["btd"] = lin(keys[8], 2 * h_dim, t_dim)
    p["wf"], p["bf"] = lin(keys[9], 6 * h_dim, 1)
    return p


def misa_reference(v, a, t, p):
    am, tm = a.mean(1), t.mean(1)
    enc = lambda x, w, b: jnp.maximum(x @ w + b, 0.0)
    cv, ca, ct = enc(v, p["wcv"], p["bcv"]), enc(am, p["wca"], p["bca"]), enc(tm, p["wct"], p["bct"])
    pv, pa, pt = enc(v, p["wpv"], p["bpv"]), enc(am, p["wpa"], p["bpa"]), enc(tm, p["wpt"], p["bpt"])
    rv = jnp.concatenate([cv, pv], -1) @ p["wvd"] + p["bvd"]
    ra = jnp.concatenate([ca, pa], -1) @ p["wad"] + p["bad"]
    rt = jnp.concatenate([ct, pt], -1) @ p["wtd"] + p["btd"]
    fused = jnp.concatenate([cv, ca, ct, pv, pa, pt], -1) @ p["wf"] + p["bf"]
    return fused[:, 0], rv, ra, rt


# ---------------------------------------------------------------------------
if __name__ == "__main__":
    B, S = 2, 8
    v_dim, a_dim, t_dim, h_dim = 16, 12, 20, 32

    key = jax.random.PRNGKey(0)
    kv, ka, kt, kp = jax.random.split(key, 4)
    v = jax.random.normal(kv, (B, v_dim), jnp.float32)        # fd['v']
    a = jax.random.normal(ka, (B, S, a_dim), jnp.float32)     # fd['a']
    t = jax.random.normal(kt, (B, S, t_dim), jnp.float32)     # fd['t'] (use_live_text)
    params = init_params(kp, v_dim, a_dim, t_dim, h_dim)

    ref = misa_reference(v, a, t, params)

    # f32 path: packing is an exact algebraic rewrite -> tight tolerance.
    out_f32 = misa_forward(v, a, t, params, compute_dtype=jnp.float32)
    jax.block_until_ready(out_f32)
    for got, want in zip(out_f32, ref):
        assert jnp.allclose(got, want, rtol=1e-4, atol=1e-4), "f32 mismatch"

    # bf16 path (default / perf-optimized): bf16 compute + bf16 output.
    out_bf16 = misa_forward(v, a, t, params)
    jax.block_until_ready(out_bf16)
    for got, want in zip(out_bf16, ref):
        assert jnp.allclose(got.astype(jnp.float32), want,
                            rtol=5e-2, atol=5e-2), "bf16 mismatch"

    print("KERNEL_OK")
</pallas_src>

<mosaic_0001>
module attributes {stable_mosaic.version = 11 : i64} {
  func.func @misa_kernel(%arg0: i32, %arg1: memref<2x16xf32, #tpu.memory_space<vmem>>, %arg2: memref<2x8x12xf32, #tpu.memory_space<vmem>>, %arg3: memref<2x8x20xf32, #tpu.memory_space<vmem>>, %arg4: memref<16x64xf32, #tpu.memory_space<vmem>>, %arg5: memref<12x64xf32, #tpu.memory_space<vmem>>, %arg6: memref<20x64xf32, #tpu.memory_space<vmem>>, %arg7: memref<1x64xf32, #tpu.memory_space<vmem>>, %arg8: memref<1x64xf32, #tpu.memory_space<vmem>>, %arg9: memref<1x64xf32, #tpu.memory_space<vmem>>, %arg10: memref<64x49xf32, #tpu.memory_space<vmem>>, %arg11: memref<64x49xf32, #tpu.memory_space<vmem>>, %arg12: memref<64x49xf32, #tpu.memory_space<vmem>>, %arg13: memref<1x49xf32, #tpu.memory_space<vmem>>, %arg14: memref<2x49xf32, #tpu.memory_space<vmem>>) attributes {dimension_semantics = [#tpu.dimension_semantics<parallel>], iteration_bounds = array<i64: 1>, scalar_prefetch = 0 : i64, scratch_operands = 0 : i64, tpu.core_type = #tpu.core_type<tc>, window_params = [{transform_indices = @transform_0, window_bounds = array<i64: 2, 16>}, {transform_indices = @transform_1, window_bounds = array<i64: 2, 8, 12>}, {transform_indices = @transform_2, window_bounds = array<i64: 2, 8, 20>}, {pipeline_mode = #tpu.pipeline_mode<synchronous>, transform_indices = @transform_3, window_bounds = array<i64: 16, 64>}, {pipeline_mode = #tpu.pipeline_mode<synchronous>, transform_indices = @transform_4, window_bounds = array<i64: 12, 64>}, {pipeline_mode = #tpu.pipeline_mode<synchronous>, transform_indices = @transform_5, window_bounds = array<i64: 20, 64>}, {pipeline_mode = #tpu.pipeline_mode<synchronous>, transform_indices = @transform_6, window_bounds = array<i64: 1, 64>}, {pipeline_mode = #tpu.pipeline_mode<synchronous>, transform_indices = @transform_7, window_bounds = array<i64: 1, 64>}, {pipeline_mode = #tpu.pipeline_mode<synchronous>, transform_indices = @transform_8, window_bounds = array<i64: 1, 64>}, {pipeline_mode = #tpu.pipeline_mode<synchronous>, transform_indices = @transform_9, window_bounds = array<i64: 64, 49>}, {pipeline_mode = #tpu.pipeline_mode<synchronous>, transform_indices = @transform_10, window_bounds = array<i64: 64, 49>}, {pipeline_mode = #tpu.pipeline_mode<synchronous>, transform_indices = @transform_11, window_bounds = array<i64: 64, 49>}, {pipeline_mode = #tpu.pipeline_mode<synchronous>, transform_indices = @transform_12, window_bounds = array<i64: 1, 49>}, {transform_indices = @transform_13, window_bounds = array<i64: 2, 49>}]} {
    %c0 = arith.constant 0 : index
    %c0_0 = arith.constant 0 : index
    %c0_1 = arith.constant 0 : index
    %0 = vector.load %arg2[%c0, %c0_0, %c0_1] : memref<2x8x12xf32, #tpu.memory_space<vmem>>, vector<2x8x12xf32>
    %cst = arith.constant dense<0.000000e+00> : vector<2x12xf32>
    %1 = vector.multi_reduction <add>, %0, %cst [1] : vector<2x8x12xf32> to vector<2x12xf32>
    %cst_2 = arith.constant 8.000000e+00 : f32
    %2 = vector.broadcast %cst_2 : f32 to vector<2x12xf32>
    %3 = arith.divf %1, %2 : vector<2x12xf32>
    %c0_3 = arith.constant 0 : index
    %c0_4 = arith.constant 0 : index
    %c0_5 = arith.constant 0 : index
    %4 = vector.load %arg3[%c0_3, %c0_4, %c0_5] : memref<2x8x20xf32, #tpu.memory_space<vmem>>, vector<2x8x20xf32>
    %cst_6 = arith.constant dense<0.000000e+00> : vector<2x20xf32>
    %5 = vector.multi_reduction <add>, %4, %cst_6 [1] : vector<2x8x20xf32> to vector<2x20xf32>
    %cst_7 = arith.constant 8.000000e+00 : f32
    %6 = vector.broadcast %cst_7 : f32 to vector<2x20xf32>
    %7 = arith.divf %5, %6 : vector<2x20xf32>
    %c0_8 = arith.constant 0 : index
    %c0_9 = arith.constant 0 : index
    %8 = vector.load %arg1[%c0_8, %c0_9] : memref<2x16xf32, #tpu.memory_space<vmem>>, vector<2x16xf32>
    %c0_10 = arith.constant 0 : index
    %c0_11 = arith.constant 0 : index
    %9 = vector.load %arg4[%c0_10, %c0_11] : memref<16x64xf32, #tpu.memory_space<vmem>>, vector<16x64xf32>
    %cst_12 = arith.constant dense<0.000000e+00> : vector<2x64xf32>
    %10 = tpu.matmul %8, %9, %cst_12 {dimension_numbers = #tpu.dot_dimension_numbers<[1], [0], [0], [1], [0, 0, 1, 1], [], []>} : vector<2x16xf32>, vector<16x64xf32>, vector<2x64xf32> -> vector<2x64xf32>
    %c0_13 = arith.constant 0 : index
    %c0_14 = arith.constant 0 : index
    %11 = vector.load %arg7[%c0_13, %c0_14] : memref<1x64xf32, #tpu.memory_space<vmem>>, vector<1x64xf32>
    %12 = vector.broadcast %11 : vector<1x64xf32> to vector<2x64xf32>
    %13 = arith.addf %10, %12 : vector<2x64xf32>
    %cst_15 = arith.constant 0.000000e+00 : f32
    %14 = vector.broadcast %cst_15 : f32 to vector<2x64xf32>
    %15 = arith.maximumf %13, %14 : vector<2x64xf32>
    %c0_16 = arith.constant 0 : index
    %c0_17 = arith.constant 0 : index
    %16 = vector.load %arg5[%c0_16, %c0_17] : memref<12x64xf32, #tpu.memory_space<vmem>>, vector<12x64xf32>
    %cst_18 = arith.constant dense<0.000000e+00> : vector<2x64xf32>
    %17 = tpu.matmul %3, %16, %cst_18 {dimension_numbers = #tpu.dot_dimension_numbers<[1], [0], [0], [1], [0, 0, 1, 1], [], []>} : vector<2x12xf32>, vector<12x64xf32>, vector<2x64xf32> -> vector<2x64xf32>
    %c0_19 = arith.constant 0 : index
    %c0_20 = arith.constant 0 : index
    %18 = vector.load %arg8[%c0_19, %c0_20] : memref<1x64xf32, #tpu.memory_space<vmem>>, vector<1x64xf32>
    %19 = vector.broadcast %18 : vector<1x64xf32> to vector<2x64xf32>
    %20 = arith.addf %17, %19 : vector<2x64xf32>
    %cst_21 = arith.constant 0.000000e+00 : f32
    %21 = vector.broadcast %cst_21 : f32 to vector<2x64xf32>
    %22 = arith.maximumf %20, %21 : vector<2x64xf32>
    %c0_22 = arith.constant 0 : index
    %c0_23 = arith.constant 0 : index
    %23 = vector.load %arg6[%c0_22, %c0_23] : memref<20x64xf32, #tpu.memory_space<vmem>>, vector<20x64xf32>
    %cst_24 = arith.constant dense<0.000000e+00> : vector<2x64xf32>
    %24 = tpu.matmul %7, %23, %cst_24 {dimension_numbers = #tpu.dot_dimension_numbers<[1], [0], [0], [1], [0, 0, 1, 1], [], []>} : vector<2x20xf32>, vector<20x64xf32>, vector<2x64xf32> -> vector<2x64xf32>
    %c0_25 = arith.constant 0 : index
    %c0_26 = arith.constant 0 : index
    %25 = vector.load %arg9[%c0_25, %c0_26] : memref<1x64xf32, #tpu.memory_space<vmem>>, vector<1x64xf32>
    %26 = vector.broadcast %25 : vector<1x64xf32> to vector<2x64xf32>
    %27 = arith.addf %24, %26 : vector<2x64xf32>
    %cst_27 = arith.constant 0.000000e+00 : f32
    %28 = vector.broadcast %cst_27 : f32 to vector<2x64xf32>
    %29 = arith.maximumf %27, %28 : vector<2x64xf32>
    %c0_28 = arith.constant 0 : index
    %c0_29 = arith.constant 0 : index
    %30 = vector.load %arg10[%c0_28, %c0_29] : memref<64x49xf32, #tpu.memory_space<vmem>>, vector<64x49xf32>
    %cst_30 = arith.constant dense<0.000000e+00> : vector<2x49xf32>
    %31 = tpu.matmul %15, %30, %cst_30 {dimension_numbers = #tpu.dot_dimension_numbers<[1], [0], [0], [1], [0, 0, 1, 1], [], []>} : vector<2x64xf32>, vector<64x49xf32>, vector<2x49xf32> -> vector<2x49xf32>
    %c0_31 = arith.constant 0 : index
    %c0_32 = arith.constant 0 : index
    %32 = vector.load %arg11[%c0_31, %c0_32] : memref<64x49xf32, #tpu.memory_space<vmem>>, vector<64x49xf32>
    %cst_33 = arith.constant dense<0.000000e+00> : vector<2x49xf32>
    %33 = tpu.matmul %22, %32, %cst_33 {dimension_numbers = #tpu.dot_dimension_numbers<[1], [0], [0], [1], [0, 0, 1, 1], [], []>} : vector<2x64xf32>, vector<64x49xf32>, vector<2x49xf32> -> vector<2x49xf32>
    %34 = arith.addf %31, %33 : vector<2x49xf32>
    %c0_34 = arith.constant 0 : index
    %c0_35 = arith.constant 0 : index
    %35 = vector.load %arg12[%c0_34, %c0_35] : memref<64x49xf32, #tpu.memory_space<vmem>>, vector<64x49xf32>
    %cst_36 = arith.constant dense<0.000000e+00> : vector<2x49xf32>
    %36 = tpu.matmul %29, %35, %cst_36 {dimension_numbers = #tpu.dot_dimension_numbers<[1], [0], [0], [1], [0, 0, 1, 1], [], []>} : vector<2x64xf32>, vector<64x49xf32>, vector<2x49xf32> -> vector<2x49xf32>
    %37 = arith.addf %34, %36 : vector<2x49xf32>
    %c0_37 = arith.constant 0 : index
    %c0_38 = arith.constant 0 : index
    %38 = vector.load %arg13[%c0_37, %c0_38] : memref<1x49xf32, #tpu.memory_space<vmem>>, vector<1x49xf32>
    %39 = vector.broadcast %38 : vector<1x49xf32> to vector<2x49xf32>
    %40 = arith.addf %37, %39 : vector<2x49xf32>
    %c0_39 = arith.constant 0 : index
    %c0_40 = arith.constant 0 : index
    %41 = vector.load %arg14[%c0_39, %c0_40] : memref<2x49xf32, #tpu.memory_space<vmem>>, vector<2x49xf32>
    tpu.vector_store %arg14[%c0_39, %c0_40], %40 {strides = array<i32>} : memref<2x49xf32, #tpu.memory_space<vmem>>, vector<2x49xf32>,
    return
  }
  func.func @transform_0(%arg0: i32) -> (i32, i32) {
    %c0_i32 = arith.constant 0 : i32
    %c0_i32_0 = arith.constant 0 : i32
    return %arg0, %c0_i32 : i32, i32
  }
  func.func @transform_1(%arg0: i32) -> (i32, i32, i32) {
    %c0_i32 = arith.constant 0 : i32
    %c0_i32_0 = arith.constant 0 : i32
    %c0_i32_1 = arith.constant 0 : i32
    return %arg0, %c0_i32, %c0_i32_0 : i32, i32, i32
  }
  func.func @transform_2(%arg0: i32) -> (i32, i32, i32) {
    %c0_i32 = arith.constant 0 : i32
    %c0_i32_0 = arith.constant 0 : i32
    %c0_i32_1 = arith.constant 0 : i32
    return %arg0, %c0_i32, %c0_i32_0 : i32, i32, i32
  }
  func.func @transform_3(%arg0: i32) -> (i32, i32) {
    %c0_i32 = arith.constant 0 : i32
    %c0_i32_0 = arith.constant 0 : i32
    %c0_i32_1 = arith.constant 0 : i32
    return %c0_i32, %c0_i32_0 : i32, i32
  }
  func.func @transform_4(%arg0: i32) -> (i32, i32) {
    %c0_i32 = arith.constant 0 : i32
    %c0_i32_0 = arith.constant 0 : i32
    %c0_i32_1 = arith.constant 0 : i32
    return %c0_i32, %c0_i32_0 : i32, i32
  }
  func.func @transform_5(%arg0: i32) -> (i32, i32) {
    %c0_i32 = arith.constant 0 : i32
    %c0_i32_0 = arith.constant 0 : i32
    %c0_i32_1 = arith.constant 0 : i32
    return %c0_i32, %c0_i32_0 : i32, i32
  }
  func.func @transform_6(%arg0: i32) -> (i32, i32) {
    %c0_i32 = arith.constant 0 : i32
    %c0_i32_0 = arith.constant 0 : i32
    %c0_i32_1 = arith.constant 0 : i32
    return %c0_i32, %c0_i32_0 : i32, i32
  }
  func.func @transform_7(%arg0: i32) -> (i32, i32) {
    %c0_i32 = arith.constant 0 : i32
    %c0_i32_0 = arith.constant 0 : i32
    %c0_i32_1 = arith.constant 0 : i32
    return %c0_i32, %c0_i32_0 : i32, i32
  }
  func.func @transform_8(%arg0: i32) -> (i32, i32) {
    %c0_i32 = arith.constant 0 : i32
    %c0_i32_0 = arith.constant 0 : i32
    %c0_i32_1 = arith.constant 0 : i32
    return %c0_i32, %c0_i32_0 : i32, i32
  }
  func.func @transform_9(%arg0: i32) -> (i32, i32) {
    %c0_i32 = arith.constant 0 : i32
    %c0_i32_0 = arith.constant 0 : i32
    %c0_i32_1 = arith.constant 0 : i32
    return %c0_i32, %c0_i32_0 : i32, i32
  }
  func.func @transform_10(%arg0: i32) -> (i32, i32) {
    %c0_i32 = arith.constant 0 : i32
    %c0_i32_0 = arith.constant 0 : i32
    %c0_i32_1 = arith.constant 0 : i32
    return %c0_i32, %c0_i32_0 : i32, i32
  }
  func.func @transform_11(%arg0: i32) -> (i32, i32) {
    %c0_i32 = arith.constant 0 : i32
    %c0_i32_0 = arith.constant 0 : i32
    %c0_i32_1 = arith.constant 0 : i32
    return %c0_i32, %c0_i32_0 : i32, i32
  }
  func.func @transform_12(%arg0: i32) -> (i32, i32) {
    %c0_i32 = arith.constant 0 : i32
    %c0_i32_0 = arith.constant 0 : i32
    %c0_i32_1 = arith.constant 0 : i32
    return %c0_i32, %c0_i32_0 : i32, i32
  }
  func.func @transform_13(%arg0: i32) -> (i32, i32) {
    %c0_i32 = arith.constant 0 : i32
    %c0_i32_0 = arith.constant 0 : i32
    return %arg0, %c0_i32 : i32, i32
  }
}

</mosaic_0001>

<llo_original>
// kernel: misa_forward.1
$region0: #{misa_forward.1}
  #allocation0 [shape = 'u32[]', space=smem, size = 0x4, offset = 0x4, fixed_abs, tag = 'smem constant byte address 0x4 - core index']
  #allocation1 [shape = 'u32[144,128]{1,0:T(1,128)}', space=vmem, size = 0x12000, scoped, tag = 'internal scratch']
  %s0 = inlined_call_operand.vmem [shape: f32[2,16], index: 0, kind: input, shape index: {}]
  %s1 = inlined_call_operand.vmem [shape: f32[2,8,12], index: 1, kind: input, shape index: {}]
  %s2 = inlined_call_operand.vmem [shape: f32[2,8,20], index: 2, kind: input, shape index: {}]
  %s3 = inlined_call_operand.vmem [shape: f32[16,64], index: 3, kind: input, shape index: {}]
  %s4 = inlined_call_operand.vmem [shape: f32[12,64], index: 4, kind: input, shape index: {}]
  %s5 = inlined_call_operand.vmem [shape: f32[20,64], index: 5, kind: input, shape index: {}]
  %s6 = inlined_call_operand.vmem [shape: f32[1,64], index: 6, kind: input, shape index: {}]
  %s7 = inlined_call_operand.vmem [shape: f32[1,64], index: 7, kind: input, shape index: {}]
  %s8 = inlined_call_operand.vmem [shape: f32[1,64], index: 8, kind: input, shape index: {}]
  %s9 = inlined_call_operand.vmem [shape: f32[64,49], index: 9, kind: input, shape index: {}]
  %s10 = inlined_call_operand.vmem [shape: f32[64,49], index: 10, kind: input, shape index: {}]
  %s11 = inlined_call_operand.vmem [shape: f32[64,49], index: 11, kind: input, shape index: {}]
  %s12 = inlined_call_operand.vmem [shape: f32[1,49], index: 12, kind: input, shape index: {}]
  %s13 = inlined_call_operand.vmem [shape: f32[2,49], index: 13, kind: output, shape index: {}]
  %s14 = sld [smem:[#allocation0]]
  $region62: #{misa_forward.1} parent=0
    _
  %s16 = ssub.s32 1, %s14
  %s17 = scalar_select 0, %s16, %s14
  // Predicated region
  $region2: #{misa_forward.1} parent=0 // pred_check
    _
  $region3: #{misa_forward.1} parent=0 // pred_check_branch
    %19 = sbr.rel (0) target = $region5
  $region4: #{misa_forward.1} parent=0 // pred_region
    _
  $region5: #{misa_forward.1} parent=0 // pred_fallthru
    _
  // Predicated region
  $region6: #{misa_forward.1} parent=0 // pred_check
    _
  $region7: #{misa_forward.1} parent=0 // pred_check_branch
    %21 = sbr.rel (0) target = $region9
  $region8: #{misa_forward.1} parent=0 // pred_region
    _
  $region9: #{misa_forward.1} parent=0 // pred_fallthru
    _
  // Predicated region
  $region10: #{misa_forward.1} parent=0 // pred_check
    _
  $region11: #{misa_forward.1} parent=0 // pred_check_branch
    %23 = sbr.rel (0) target = $region13
  $region12: #{misa_forward.1} parent=0 // pred_region
    _
  $region13: #{misa_forward.1} parent=0 // pred_fallthru
    _
  // Predicated region
  $region14: #{misa_forward.1} parent=0 // pred_check
    _
  $region15: #{misa_forward.1} parent=0 // pred_check_branch
    %25 = sbr.rel (0) target = $region17
  $region16: #{misa_forward.1} parent=0 // pred_region
    _
  $region17: #{misa_forward.1} parent=0 // pred_fallthru
    _
  // Predicated region
  $region18: #{misa_forward.1} parent=0 // pred_check
    _
  $region19: #{misa_forward.1} parent=0 // pred_check_branch
    %27 = sbr.rel (0) target = $region21
  $region20: #{misa_forward.1} parent=0 // pred_region
    _
  $region21: #{misa_forward.1} parent=0 // pred_fallthru
    _
  // Predicated region
  $region22: #{misa_forward.1} parent=0 // pred_check
    _
  $region23: #{misa_forward.1} parent=0 // pred_check_branch
    %29 = sbr.rel (0) target = $region25
  $region24: #{misa_forward.1} parent=0 // pred_region
    _
  $region25: #{misa_forward.1} parent=0 // pred_fallthru
    _
  // Predicated region
  $region26: #{misa_forward.1} parent=0 // pred_check
    _
  $region27: #{misa_forward.1} parent=0 // pred_check_branch
    %31 = sbr.rel (0) target = $region29
  $region28: #{misa_forward.1} parent=0 // pred_region
    _
  $region29: #{misa_forward.1} parent=0 // pred_fallthru
    _
  // Predicated region
  $region30: #{misa_forward.1} parent=0 // pred_check
    _
  $region31: #{misa_forward.1} parent=0 // pred_check_branch
    %33 = sbr.rel (0) target = $region33
  $region32: #{misa_forward.1} parent=0 // pred_region
    _
  $region33: #{misa_forward.1} parent=0 // pred_fallthru
    _
  // Predicated region
  $region34: #{misa_forward.1} parent=0 // pred_check
    _
  $region35: #{misa_forward.1} parent=0 // pred_check_branch
    %35 = sbr.rel (0) target = $region37
  $region36: #{misa_forward.1} parent=0 // pred_region
    _
  $region37: #{misa_forward.1} parent=0 // pred_fallthru
    _
  // Predicated region
  $region38: #{misa_forward.1} parent=0 // pred_check
    _
  $region39: #{misa_forward.1} parent=0 // pred_check_branch
    %37 = sbr.rel (0) target = $region41
  $region40: #{misa_forward.1} parent=0 // pred_region
    _
  $region41: #{misa_forward.1} parent=0 // pred_fallthru
    _
  // Predicated region
  $region42: #{misa_forward.1} parent=0 // pred_check
    _
  $region43: #{misa_forward.1} parent=0 // pred_check_branch
    %39 = sbr.rel (0) target = $region45
  $region44: #{misa_forward.1} parent=0 // pred_region
    _
  $region45: #{misa_forward.1} parent=0 // pred_fallthru
    _
  // Predicated region
  $region46: #{misa_forward.1} parent=0 // pred_check
    _
  $region47: #{misa_forward.1} parent=0 // pred_check_branch
    %41 = sbr.rel (0) target = $region49
  $region48: #{misa_forward.1} parent=0 // pred_region
    _
  $region49: #{misa_forward.1} parent=0 // pred_fallthru
    _
  // Predicated region
  $region50: #{misa_forward.1} parent=0 // pred_check
    _
  $region51: #{misa_forward.1} parent=0 // pred_check_branch
    %43 = sbr.rel (0) target = $region53
  $region52: #{misa_forward.1} parent=0 // pred_region
    _
  $region53: #{misa_forward.1} parent=0 // pred_fallthru
    _
  %v44 = vld [vmem:[%s1] sm:$0xff]
  %v45 = vld [vmem:[%s1 + $0x8] sm:$0xff]
  %vm46 = vcmask 97280
  %v47 = vsel %vm46, %v44, 0.0
  %v48 = vrot.slane %v47, 4
  %v49 = vadd.f32 %v47, %v48
  %v50 = vrot.slane %v49, 2
  %v51 = vadd.f32 %v49, %v50
  %v52 = vrot.slane %v51, 1
  %v53 = vadd.f32 %v51, %v52
  %v54 = vsel %vm46, %v45, 0.0
  %v55 = vrot.slane %v54, 4
  %v56 = vadd.f32 %v54, %v55
  %v57 = vrot.slane %v56, 2
  %v58 = vadd.f32 %v56, %v57
  %v59 = vrot.slane %v58, 1
  %v60 = vadd.f32 %v58, %v59
  %v61 = vrcp.pop 8.0
  %v62 = vmul.f32 %v53, %v61
  %v63 = vmul.f32 %v60, %v61
  %v64 = vld [vmem:[%s2] sm:$0xff]
  %v65 = vld [vmem:[%s2 + $0x8] sm:$0xff]
  %vm66 = vcmask 162816
  %v67 = vsel %vm66, %v64, 0.0
  %v68 = vrot.slane %v67, 4
  %v69 = vadd.f32 %v67, %v68
  %v70 = vrot.slane %v69, 2
  %v71 = vadd.f32 %v69, %v70
  %v72 = vrot.slane %v71, 1
  %v73 = vadd.f32 %v71, %v72
  %v74 = vsel %vm66, %v65, 0.0
  %v75 = vrot.slane %v74, 4
  %v76 = vadd.f32 %v74, %v75
  %v77 = vrot.slane %v76, 2
  %v78 = vadd.f32 %v76, %v77
  %v79 = vrot.slane %v78, 1
  %v80 = vadd.f32 %v78, %v79
  %v81 = vmul.f32 %v73, %v61
  %v82 = vmul.f32 %v80, %v61
  %v83 = vld [vmem:[%s0] sm:$0x3]
  %v84 = vld [vmem:[%s3] sm:$0xff]
  %v85 = vld [vmem:[%s3 + $0x8] sm:$0xff]
  %v86 = vld [vmem:[%s6] sm:$0x1]
  %v88 = vlaneseq
  %v89 = vshrl.u32 %v88, 7
  %v90 = vsub.s32 0, %v89
  %v91 = vrot.slane %v86, %v90
  %vm93 = vcmask 130048
  %v95 = vsel %vm93, %v83, 0
  %97 = vmatprep.subr.mxu0 0.0
  %98 = vmatpush1.msra.mxu0 0.0
  %99 = vmatprep.subr.mxu0 0.0
  %100 = vmatpush1.msra.mxu0 0.0
  %101 = vmatprep.subr.mxu0 0.0
  %102 = vmatpush1.msra.mxu0 0.0
  %103 = vmatprep.subr.mxu0 0.0
  %104 = vmatpush1.msra.mxu0 0.0
  %105 = vmatprep.subr.mxu0 0.0
  %106 = vmatpush1.msra.mxu0 0.0
  %107 = vmatprep.subr.mxu0 0.0
  %108 = vmatpush1.msra.mxu0 0.0
  %109 = vmatprep.subr.mxu0 0.0
  %110 = vmatpush1.msra.mxu0 0.0
  %111 = vmatprep.subr.mxu0 0.0
  %112 = vmatpush1.msra.mxu0 0.0
  %113 = vmatprep.subr.mxu0 0.0
  %114 = vmatpush1.msra.mxu0 0.0
  %115 = vmatprep.subr.mxu0 0.0
  %116 = vmatpush1.msra.mxu0 0.0
  %117 = vmatprep.subr.mxu0 0.0
  %118 = vmatpush1.msra.mxu0 0.0
  %119 = vmatprep.subr.mxu0 0.0
  %120 = vmatpush1.msra.mxu0 0.0
  %121 = vmatprep.subr.mxu0 0.0
  %122 = vmatpush1.msra.mxu0 0.0
  %123 = vmatprep.subr.mxu0 0.0
  %124 = vmatpush1.msra.mxu0 0.0
  %125 = vmatprep.subr.mxu0 0.0
  %126 = vmatpush1.msra.mxu0 %v85
  %127 = vmatprep.subr.mxu0 0.0
  %128 = vmatpush1.msra.mxu0 %v84
  %129 = vmatprep.subr.mxu0 0.0
  %130 = vmatpush2.msra.mxu0 0.0
  %131 = vmatprep.subr.mxu0 0.0
  %132 = vmatpush2.msra.mxu0 0.0
  %133 = vmatprep.subr.mxu0 0.0
  %134 = vmatpush2.msra.mxu0 0.0
  %135 = vmatprep.subr.mxu0 0.0
  %136 = vmatpush2.msra.mxu0 0.0
  %137 = vmatprep.subr.mxu0 0.0
  %138 = vmatpush2.msra.mxu0 0.0
  %139 = vmatprep.subr.mxu0 0.0
  %140 = vmatpush2.msra.mxu0 0.0
  %141 = vmatprep.subr.mxu0 0.0
  %142 = vmatpush2.msra.mxu0 0.0
  %143 = vmatprep.subr.mxu0 0.0
  %144 = vmatpush2.msra.mxu0 0.0
  %145 = vmatprep.subr.mxu0 0.0
  %146 = vmatpush2.msra.mxu0 0.0
  %147 = vmatprep.subr.mxu0 0.0
  %148 = vmatpush2.msra.mxu0 0.0
  %149 = vmatprep.subr.mxu0 0.0
  %150 = vmatpush2.msra.mxu0 0.0
  %151 = vmatprep.subr.mxu0 0.0
  %152 = vmatpush2.msra.mxu0 0.0
  %153 = vmatprep.subr.mxu0 0.0
  %154 = vmatpush2.msra.mxu0 0.0
  %155 = vmatprep.subr.mxu0 0.0
  %156 = vmatpush2.msra.mxu0 0.0
  %157 = vmatprep.subr.mxu0 0.0
  %158 = vmatpush2.msra.mxu0 0.0
  %159 = vmatprep.subr.mxu0 0.0
  %160 = vmatpush2.msra.mxu0 0.0
  %161 = vmatprep.mubr.f32.mxu0 0.0
  %162 = vmatmul.mubr.f32.gmra.mxu0 %v95
  %v163 = vpop.f32.mrf.mxu0
  %v164 = vadd.f32 %v91, %v163
  %v165 = vpop.f32.mrf.mxu0
  %166 = vdwg.mxu0
  %v167 = vmax.f32 %v164, 0.0
  %v168 = vld [vmem:[%s4] sm:$0xff]
  %v169 = vld [vmem:[%s4 + $0x8] sm:$0xf]
  %v170 = vld [vmem:[%s7] sm:$0x1]
  %v172 = vlaneseq
  %v173 = vshrl.u32 %v172, 7
  %v174 = vsub.s32 0, %v173
  %v175 = vrot.slane %v170, %v174
  %vm179 = vcmask 1041409
  %v180 = vsel %vm179, %v63, %v62
  %v181 = vsel %vm46, %v180, 0
  %vm183 = vcmask 1043456
  %v185 = vsel %vm183, %v169, 0
  %187 = vmatprep.subr.mxu0 0.0
  %188 = vmatpush1.msra.mxu0 0.0
  %189 = vmatprep.subr.mxu0 0.0
  %190 = vmatpush1.msra.mxu0 0.0
  %191 = vmatprep.subr.mxu0 0.0
  %192 = vmatpush1.msra.mxu0 0.0
  %193 = vmatprep.subr.mxu0 0.0
  %194 = vmatpush1.msra.mxu0 0.0
  %195 = vmatprep.subr.mxu0 0.0
  %196 = vmatpush1.msra.mxu0 0.0
  %197 = vmatprep.subr.mxu0 0.0
  %198 = vmatpush1.msra.mxu0 0.0
  %199 = vmatprep.subr.mxu0 0.0
  %200 = vmatpush1.msra.mxu0 0.0
  %201 = vmatprep.subr.mxu0 0.0
  %202 = vmatpush1.msra.mxu0 0.0
  %203 = vmatprep.subr.mxu0 0.0
  %204 = vmatpush1.msra.mxu0 0.0
  %205 = vmatprep.subr.mxu0 0.0
  %206 = vmatpush1.msra.mxu0 0.0
  %207 = vmatprep.subr.mxu0 0.0
  %208 = vmatpush1.msra.mxu0 0.0
  %209 = vmatprep.subr.mxu0 0.0
  %210 = vmatpush1.msra.mxu0 0.0
  %211 = vmatprep.subr.mxu0 0.0
  %212 = vmatpush1.msra.mxu0 0.0
  %213 = vmatprep.subr.mxu0 0.0
  %214 = vmatpush1.msra.mxu0 0.0
  %215 = vmatprep.subr.mxu0 0.0
  %216 = vmatpush1.msra.mxu0 %v185
  %217 = vmatprep.subr.mxu0 0.0
  %218 = vmatpush1.msra.mxu0 %v168
  %219 = vmatprep.subr.mxu0 0.0
  %220 = vmatpush2.msra.mxu0 0.0
  %221 = vmatprep.subr.mxu0 0.0
  %222 = vmatpush2.msra.mxu0 0.0
  %223 = vmatprep.subr.mxu0 0.0
  %224 = vmatpush2.msra.mxu0 0.0
  %225 = vmatprep.subr.mxu0 0.0
  %226 = vmatpush2.msra.mxu0 0.0
  %227 = vmatprep.subr.mxu0 0.0
  %228 = vmatpush2.msra.mxu0 0.0
  %229 = vmatprep.subr.mxu0 0.0
  %230 = vmatpush2.msra.mxu0 0.0
  %231 = vmatprep.subr.mxu0 0.0
  %232 = vmatpush2.msra.mxu0 0.0
  %233 = vmatprep.subr.mxu0 0.0
  %234 = vmatpush2.msra.mxu0 0.0
  %235 = vmatprep.subr.mxu0 0.0
  %236 = vmatpush2.msra.mxu0 0.0
  %237 = vmatprep.subr.mxu0 0.0
  %238 = vmatpush2.msra.mxu0 0.0
  %239 = vmatprep.subr.mxu0 0.0
  %240 = vmatpush2.msra.mxu0 0.0
  %241 = vmatprep.subr.mxu0 0.0
  %242 = vmatpush2.msra.mxu0 0.0
  %243 = vmatprep.subr.mxu0 0.0
  %244 = vmatpush2.msra.mxu0 0.0
  %245 = vmatprep.subr.mxu0 0.0
  %246 = vmatpush2.msra.mxu0 0.0
  %247 = vmatprep.subr.mxu0 0.0
  %248 = vmatpush2.msra.mxu0 0.0
  %249 = vmatprep.subr.mxu0 0.0
  %250 = vmatpush2.msra.mxu0 0.0
  %251 = vmatprep.mubr.f32.mxu0 0.0
  %252 = vmatmul.mubr.f32.gmra.mxu0 %v181
  %v253 = vpop.f32.mrf.mxu0
  %v254 = vadd.f32 %v175, %v253
  %v255 = vpop.f32.mrf.mxu0
  %256 = vdwg.mxu0
  %v257 = vmax.f32 %v254, 0.0
  %v258 = vld [vmem:[%s5] sm:$0xff]
  %v259 = vld [vmem:[%s5 + $0x8] sm:$0xff]
  %v260 = vld [vmem:[%s5 + $0x10] sm:$0xf]
  %v261 = vld [vmem:[%s8] sm:$0x1]
  %v263 = vlaneseq
  %v264 = vshrl.u32 %v263, 7
  %v265 = vsub.s32 0, %v264
  %v266 = vrot.slane %v261, %v265
  %v270 = vsel %vm179, %v82, %v81
  %v271 = vsel %vm66, %v270, 0
  %v274 = vsel %vm183, %v260, 0
  %276 = vmatprep.subr.mxu0 0.0
  %277 = vmatpush1.msra.mxu0 0.0
  %278 = vmatprep.subr.mxu0 0.0
  %279 = vmatpush1.msra.mxu0 0.0
  %280 = vmatprep.subr.mxu0 0.0
  %281 = vmatpush1.msra.mxu0 0.0
  %282 = vmatprep.subr.mxu0 0.0
  %283 = vmatpush1.msra.mxu0 0.0
  %284 = vmatprep.subr.mxu0 0.0
  %285 = vmatpush1.msra.mxu0 0.0
  %286 = vmatprep.subr.mxu0 0.0
  %287 = vmatpush1.msra.mxu0 0.0
  %288 = vmatprep.subr.mxu0 0.0
  %289 = vmatpush1.msra.mxu0 0.0
  %290 = vmatprep.subr.mxu0 0.0
  %291 = vmatpush1.msra.mxu0 0.0
  %292 = vmatprep.subr.mxu0 0.0
  %293 = vmatpush1.msra.mxu0 0.0
  %294 = vmatprep.subr.mxu0 0.0
  %295 = vmatpush1.msra.mxu0 0.0
  %296 = vmatprep.subr.mxu0 0.0
  %297 = vmatpush1.msra.mxu0 0.0
  %298 = vmatprep.subr.mxu0 0.0
  %299 = vmatpush1.msra.mxu0 0.0
  %300 = vmatprep.subr.mxu0 0.0
  %301 = vmatpush1.msra.mxu0 0.0
  %302 = vmatprep.subr.mxu0 0.0
  %303 = vmatpush1.msra.mxu0 %v274
  %304 = vmatprep.subr.mxu0 0.0
  %305 = vmatpush1.msra.mxu0 %v259
  %306 = vmatprep.subr.mxu0 0.0
  %307 = vmatpush1.msra.mxu0 %v258
  %308 = vmatprep.subr.mxu0 0.0
  %309 = vmatpush2.msra.mxu0 0.0
  %310 = vmatprep.subr.mxu0 0.0
  %311 = vmatpush2.msra.mxu0 0.0
  %312 = vmatprep.subr.mxu0 0.0
  %313 = vmatpush2.msra.mxu0 0.0
  %314 = vmatprep.subr.mxu0 0.0
  %315 = vmatpush2.msra.mxu0 0.0
  %316 = vmatprep.subr.mxu0 0.0
  %317 = vmatpush2.msra.mxu0 0.0
  %318 = vmatprep.subr.mxu0 0.0
  %319 = vmatpush2.msra.mxu0 0.0
  %320 = vmatprep.subr.mxu0 0.0
  %321 = vmatpush2.msra.mxu0 0.0
  %322 = vmatprep.subr.mxu0 0.0
  %323 = vmatpush2.msra.mxu0 0.0
  %324 = vmatprep.subr.mxu0 0.0
  %325 = vmatpush2.msra.mxu0 0.0
  %326 = vmatprep.subr.mxu0 0.0
  %327 = vmatpush2.msra.mxu0 0.0
  %328 = vmatprep.subr.mxu0 0.0
  %329 = vmatpush2.msra.mxu0 0.0
  %330 = vmatprep.subr.mxu0 0.0
  %331 = vmatpush2.msra.mxu0 0.0
  %332 = vmatprep.subr.mxu0 0.0
  %333 = vmatpush2.msra.mxu0 0.0
  %334 = vmatprep.subr.mxu0 0.0
  %335 = vmatpush2.msra.mxu0 0.0
  %336 = vmatprep.subr.mxu0 0.0
  %337 = vmatpush2.msra.mxu0 0.0
  %338 = vmatprep.subr.mxu0 0.0
  %339 = vmatpush2.msra.mxu0 0.0
  %340 = vmatprep.mubr.f32.mxu0 0.0
  %341 = vmatmul.mubr.f32.gmra.mxu0 %v271
  %v342 = vpop.f32.mrf.mxu0
  %v343 = vadd.f32 %v266, %v342
  %v344 = vpop.f32.mrf.mxu0
  %345 = vdwg.mxu0
  %v346 = vmax.f32 %v343, 0.0
  %v347 = vld [vmem:[%s9] sm:$0xff]
  %v348 = vld [vmem:[%s9 + $0x8] sm:$0xff]
  %v349 = vld [vmem:[%s9 + $0x10] sm:$0xff]
  %v350 = vld [vmem:[%s9 + $0x18] sm:$0xff]
  %v351 = vld [vmem:[%s9 + $0x20] sm:$0xff]
  %v352 = vld [vmem:[%s9 + $0x28] sm:$0xff]
  %v353 = vld [vmem:[%s9 + $0x30] sm:$0xff]
  %v354 = vld [vmem:[%s9 + $0x38] sm:$0xff]
  %v355 = vld [vmem:[%s10] sm:$0xff]
  %v356 = vld [vmem:[%s10 + $0x8] sm:$0xff]
  %v357 = vld [vmem:[%s10 + $0x10] sm:$0xff]
  %v358 = vld [vmem:[%s10 + $0x18] sm:$0xff]
  %v359 = vld [vmem:[%s10 + $0x20] sm:$0xff]
  %v360 = vld [vmem:[%s10 + $0x28] sm:$0xff]
  %v361 = vld [vmem:[%s10 + $0x30] sm:$0xff]
  %v362 = vld [vmem:[%s10 + $0x38] sm:$0xff]
  %vm363 = vcmask 523264
  %v365 = vsel %vm363, %v257, 0
  %367 = vmatprep.subr.mxu0 0.0
  %368 = vmatpush1.msra.mxu0 0.0
  %369 = vmatprep.subr.mxu0 0.0
  %370 = vmatpush1.msra.mxu0 0.0
  %371 = vmatprep.subr.mxu0 0.0
  %372 = vmatpush1.msra.mxu0 0.0
  %373 = vmatprep.subr.mxu0 0.0
  %374 = vmatpush1.msra.mxu0 0.0
  %375 = vmatprep.subr.mxu0 0.0
  %376 = vmatpush1.msra.mxu0 0.0
  %377 = vmatprep.subr.mxu0 0.0
  %378 = vmatpush1.msra.mxu0 0.0
  %379 = vmatprep.subr.mxu0 0.0
  %380 = vmatpush1.msra.mxu0 0.0
  %381 = vmatprep.subr.mxu0 0.0
  %382 = vmatpush1.msra.mxu0 0.0
  %383 = vmatprep.subr.mxu0 0.0
  %384 = vmatpush1.msra.mxu0 %v362
  %385 = vmatprep.subr.mxu0 0.0
  %386 = vmatpush1.msra.mxu0 %v361
  %387 = vmatprep.subr.mxu0 0.0
  %388 = vmatpush1.msra.mxu0 %v360
  %389 = vmatprep.subr.mxu0 0.0
  %390 = vmatpush1.msra.mxu0 %v359
  %391 = vmatprep.subr.mxu0 0.0
  %392 = vmatpush1.msra.mxu0 %v358
  %393 = vmatprep.subr.mxu0 0.0
  %394 = vmatpush1.msra.mxu0 %v357
  %395 = vmatprep.subr.mxu0 0.0
  %396 = vmatpush1.msra.mxu0 %v356
  %397 = vmatprep.subr.mxu0 0.0
  %398 = vmatpush1.msra.mxu0 %v355
  %399 = vmatprep.subr.mxu0 0.0
  %400 = vmatpush2.msra.mxu0 0.0
  %401 = vmatprep.subr.mxu0 0.0
  %402 = vmatpush2.msra.mxu0 0.0
  %403 = vmatprep.subr.mxu0 0.0
  %404 = vmatpush2.msra.mxu0 0.0
  %405 = vmatprep.subr.mxu0 0.0
  %406 = vmatpush2.msra.mxu0 0.0
  %407 = vmatprep.subr.mxu0 0.0
  %408 = vmatpush2.msra.mxu0 0.0
  %409 = vmatprep.subr.mxu0 0.0
  %410 = vmatpush2.msra.mxu0 0.0
  %411 = vmatprep.subr.mxu0 0.0
  %412 = vmatpush2.msra.mxu0 0.0
  %413 = vmatprep.subr.mxu0 0.0
  %414 = vmatpush2.msra.mxu0 0.0
  %415 = vmatprep.subr.mxu0 0.0
  %416 = vmatpush2.msra.mxu0 0.0
  %417 = vmatprep.subr.mxu0 0.0
  %418 = vmatpush2.msra.mxu0 0.0
  %419 = vmatprep.subr.mxu0 0.0
  %420 = vmatpush2.msra.mxu0 0.0
  %421 = vmatprep.subr.mxu0 0.0
  %422 = vmatpush2.msra.mxu0 0.0
  %423 = vmatprep.subr.mxu0 0.0
  %424 = vmatpush2.msra.mxu0 0.0
  %425 = vmatprep.subr.mxu0 0.0
  %426 = vmatpush2.msra.mxu0 0.0
  %427 = vmatprep.subr.mxu0 0.0
  %428 = vmatpush2.msra.mxu0 0.0
  %429 = vmatprep.subr.mxu0 0.0
  %430 = vmatpush2.msra.mxu0 0.0
  %431 = vmatprep.mubr.f32.mxu0 0.0
  %432 = vmatmul.mubr.f32.gmra.mxu0 %v365
  %v433 = vpop.f32.mrf.mxu0
  %v434 = vadd.f32 0.0, %v433
  %v435 = vpop.f32.mrf.mxu0
  %436 = vdwg.mxu0
  %v438 = vsel %vm363, %v167, 0
  %440 = vmatprep.subr.mxu0 0.0
  %441 = vmatpush1.msra.mxu0 0.0
  %442 = vmatprep.subr.mxu0 0.0
  %443 = vmatpush1.msra.mxu0 0.0
  %444 = vmatprep.subr.mxu0 0.0
  %445 = vmatpush1.msra.mxu0 0.0
  %446 = vmatprep.subr.mxu0 0.0
  %447 = vmatpush1.msra.mxu0 0.0
  %448 = vmatprep.subr.mxu0 0.0
  %449 = vmatpush1.msra.mxu0 0.0
  %450 = vmatprep.subr.mxu0 0.0
  %451 = vmatpush1.msra.mxu0 0.0
  %452 = vmatprep.subr.mxu0 0.0
  %453 = vmatpush1.msra.mxu0 0.0
  %454 = vmatprep.subr.mxu0 0.0
  %455 = vmatpush1.msra.mxu0 0.0
  %456 = vmatprep.subr.mxu0 0.0
  %457 = vmatpush1.msra.mxu0 %v354
  %458 = vmatprep.subr.mxu0 0.0
  %459 = vmatpush1.msra.mxu0 %v353
  %460 = vmatprep.subr.mxu0 0.0
  %461 = vmatpush1.msra.mxu0 %v352
  %462 = vmatprep.subr.mxu0 0.0
  %463 = vmatpush1.msra.mxu0 %v351
  %464 = vmatprep.subr.mxu0 0.0
  %465 = vmatpush1.msra.mxu0 %v350
  %466 = vmatprep.subr.mxu0 0.0
  %467 = vmatpush1.msra.mxu0 %v349
  %468 = vmatprep.subr.mxu0 0.0
  %469 = vmatpush1.msra.mxu0 %v348
  %470 = vmatprep.subr.mxu0 0.0
  %471 = vmatpush1.msra.mxu0 %v347
  %472 = vmatprep.subr.mxu0 0.0
  %473 = vmatpush2.msra.mxu0 0.0
  %474 = vmatprep.subr.mxu0 0.0
  %475 = vmatpush2.msra.mxu0 0.0
  %476 = vmatprep.subr.mxu0 0.0
  %477 = vmatpush2.msra.mxu0 0.0
  %478 = vmatprep.subr.mxu0 0.0
  %479 = vmatpush2.msra.mxu0 0.0
  %480 = vmatprep.subr.mxu0 0.0
  %481 = vmatpush2.msra.mxu0 0.0
  %482 = vmatprep.subr.mxu0 0.0
  %483 = vmatpush2.msra.mxu0 0.0
  %484 = vmatprep.subr.mxu0 0.0
  %485 = vmatpush2.msra.mxu0 0.0
  %486 = vmatprep.subr.mxu0 0.0
  %487 = vmatpush2.msra.mxu0 0.0
  %488 = vmatprep.subr.mxu0 0.0
  %489 = vmatpush2.msra.mxu0 0.0
  %490 = vmatprep.subr.mxu0 0.0
  %491 = vmatpush2.msra.mxu0 0.0
  %492 = vmatprep.subr.mxu0 0.0
  %493 = vmatpush2.msra.mxu0 0.0
  %494 = vmatprep.subr.mxu0 0.0
  %495 = vmatpush2.msra.mxu0 0.0
  %496 = vmatprep.subr.mxu0 0.0
  %497 = vmatpush2.msra.mxu0 0.0
  %498 = vmatprep.subr.mxu0 0.0
  %499 = vmatpush2.msra.mxu0 0.0
  %500 = vmatprep.subr.mxu0 0.0
  %501 = vmatpush2.msra.mxu0 0.0
  %502 = vmatprep.subr.mxu0 0.0
  %503 = vmatpush2.msra.mxu0 0.0
  %504 = vmatprep.mubr.f32.mxu0 0.0
  %505 = vmatmul.mubr.f32.gmra.mxu0 %v438
  %v506 = vpop.f32.mrf.mxu0
  %v507 = vadd.f32 %v434, %v506
  %v508 = vpop.f32.mrf.mxu0
  %509 = vdwg.mxu0
  %v510 = vld [vmem:[%s11] sm:$0xff]
  %v511 = vld [vmem:[%s11 + $0x8] sm:$0xff]
  %v512 = vld [vmem:[%s11 + $0x10] sm:$0xff]
  %v513 = vld [vmem:[%s11 + $0x18] sm:$0xff]
  %v514 = vld [vmem:[%s11 + $0x20] sm:$0xff]
  %v515 = vld [vmem:[%s11 + $0x28] sm:$0xff]
  %v516 = vld [vmem:[%s11 + $0x30] sm:$0xff]
  %v517 = vld [vmem:[%s11 + $0x38] sm:$0xff]
  %v519 = vsel %vm363, %v346, 0
  %521 = vmatprep.subr.mxu0 0.0
  %522 = vmatpush1.msra.mxu0 0.0
  %523 = vmatprep.subr.mxu0 0.0
  %524 = vmatpush1.msra.mxu0 0.0
  %525 = vmatprep.subr.mxu0 0.0
  %526 = vmatpush1.msra.mxu0 0.0
  %527 = vmatprep.subr.mxu0 0.0
  %528 = vmatpush1.msra.mxu0 0.0
  %529 = vmatprep.subr.mxu0 0.0
  %530 = vmatpush1.msra.mxu0 0.0
  %531 = vmatprep.subr.mxu0 0.0
  %532 = vmatpush1.msra.mxu0 0.0
  %533 = vmatprep.subr.mxu0 0.0
  %534 = vmatpush1.msra.mxu0 0.0
  %535 = vmatprep.subr.mxu0 0.0
  %536 = vmatpush1.msra.mxu0 0.0
  %537 = vmatprep.subr.mxu0 0.0
  %538 = vmatpush1.msra.mxu0 %v517
  %539 = vmatprep.subr.mxu0 0.0
  %540 = vmatpush1.msra.mxu0 %v516
  %541 = vmatprep.subr.mxu0 0.0
  %542 = vmatpush1.msra.mxu0 %v515
  %543 = vmatprep.subr.mxu0 0.0
  %544 = vmatpush1.msra.mxu0 %v514
  %545 = vmatprep.subr.mxu0 0.0
  %546 = vmatpush1.msra.mxu0 %v513
  %547 = vmatprep.subr.mxu0 0.0
  %548 = vmatpush1.msra.mxu0 %v512
  %549 = vmatprep.subr.mxu0 0.0
  %550 = vmatpush1.msra.mxu0 %v511
  %551 = vmatprep.subr.mxu0 0.0
  %552 = vmatpush1.msra.mxu0 %v510
  %553 = vmatprep.subr.mxu0 0.0
  %554 = vmatpush2.msra.mxu0 0.0
  %555 = vmatprep.subr.mxu0 0.0
  %556 = vmatpush2.msra.mxu0 0.0
  %557 = vmatprep.subr.mxu0 0.0
  %558 = vmatpush2.msra.mxu0 0.0
  %559 = vmatprep.subr.mxu0 0.0
  %560 = vmatpush2.msra.mxu0 0.0
  %561 = vmatprep.subr.mxu0 0.0
  %562 = vmatpush2.msra.mxu0 0.0
  %563 = vmatprep.subr.mxu0 0.0
  %564 = vmatpush2.msra.mxu0 0.0
  %565 = vmatprep.subr.mxu0 0.0
  %566 = vmatpush2.msra.mxu0 0.0
  %567 = vmatprep.subr.mxu0 0.0
  %568 = vmatpush2.msra.mxu0 0.0
  %569 = vmatprep.subr.mxu0 0.0
  %570 = vmatpush2.msra.mxu0 0.0
  %571 = vmatprep.subr.mxu0 0.0
  %572 = vmatpush2.msra.mxu0 0.0
  %573 = vmatprep.subr.mxu0 0.0
  %574 = vmatpush2.msra.mxu0 0.0
  %575 = vmatprep.subr.mxu0 0.0
  %576 = vmatpush2.msra.mxu0 0.0
  %577 = vmatprep.subr.mxu0 0.0
  %578 = vmatpush2.msra.mxu0 0.0
  %579 = vmatprep.subr.mxu0 0.0
  %580 = vmatpush2.msra.mxu0 0.0
  %581 = vmatprep.subr.mxu0 0.0
  %582 = vmatpush2.msra.mxu0 0.0
  %583 = vmatprep.subr.mxu0 0.0
  %584 = vmatpush2.msra.mxu0 0.0
  %585 = vmatprep.mubr.f32.mxu0 0.0
  %586 = vmatmul.mubr.f32.gmra.mxu0 %v519
  %v587 = vpop.f32.mrf.mxu0
  %v588 = vadd.f32 0.0, %v587
  %v589 = vpop.f32.mrf.mxu0
  %590 = vdwg.mxu0
  %v591 = vadd.f32 %v507, %v588
  %v592 = vld [vmem:[%s12] sm:$0x1]
  %v594 = vlaneseq
  %v595 = vshrl.u32 %v594, 7
  %v596 = vsub.s32 0, %v595
  %v597 = vrot.slane %v592, %v596
  %v599 = vadd.f32 %v591, %v597
  %vm600 = vcmask 394240
  %601 = vst.msk [vmem:[%s13] sm:$0x3] %vm600, %v599
  // Predicated region
  $region54: #{misa_forward.1} parent=0 // pred_check
    _
  $region55: #{misa_forward.1} parent=0 // pred_check_branch
    %603 = sbr.rel (0) target = $region57
  $region56: #{misa_forward.1} parent=0 // pred_region
    _
  $region57: #{misa_forward.1} parent=0 // pred_fallthru
    _
  // Predicated region
  $region58: #{misa_forward.1} parent=0 // pred_check
    _
  $region59: #{misa_forward.1} parent=0 // pred_check_branch
    %605 = sbr.rel (0) target = $region61
  $region60: #{misa_forward.1} parent=0 // pred_region
    _
  $region61: #{misa_forward.1} parent=0 // pred_fallthru
    _

</llo_original>
